<compile_context>
chip_gen: v6e
topology: v6e:2x2x1
jax: 0.10.0
libtpu: 0.0.40
codegen_flags: <defaults>
</compile_context>

<pallas_src>
import functools

import jax
import jax.numpy as jnp
from jax.experimental import pallas as pl
from jax.experimental.pallas import tpu as pltpu


def _interp_matrix(out_size: int, in_size: int) -> jnp.ndarray:
    """Row-stochastic (out_size, in_size) matrix M s.t. M @ x == PyTorch
    F.interpolate(x, mode='bilinear', align_corners=False) along one axis."""
    scale = in_size / out_size
    dst = jnp.arange(out_size, dtype=jnp.float32)
    src = (dst + 0.5) * scale - 0.5
    src = jnp.maximum(src, 0.0)                      # PyTorch clamps below at 0
    i0 = jnp.clip(jnp.floor(src).astype(jnp.int32), 0, in_size - 1)
    i1 = jnp.minimum(i0 + 1, in_size - 1)
    w1 = src - i0.astype(jnp.float32)
    w0 = 1.0 - w1
    rows = jnp.arange(out_size)
    m = jnp.zeros((out_size, in_size), jnp.float32)
    m = m.at[rows, i0].add(w0)
    m = m.at[rows, i1].add(w1)
    return m


def _make_kernel(tall: bool):
    """tall == (h >= w): statically selects the cheaper contraction order
    (always contract through the smaller spatial side first)."""

    def kernel(x_ref, wy_ref, wxt_ref, scale_ref, bias_ref, o_ref):
        ci = pl.program_id(1)
        s = scale_ref[ci]
        bb = bias_ref[ci]
        x = x_ref[0, 0]                                          # (h, w) bf16
        if tall:
            # (size, h) @ (h, w) -> (size, w), then @ (w, size) -> (size, size)
            t = jnp.dot(wy_ref[...], x, preferred_element_type=jnp.float32)
            r = jnp.dot(t.astype(jnp.bfloat16), wxt_ref[...],
                        preferred_element_type=jnp.float32)
        else:
            # (h, w) @ (w, size) -> (h, size), then (size, h) @ -> (size, size)
            t = jnp.dot(x, wxt_ref[...], preferred_element_type=jnp.float32)
            r = jnp.dot(wy_ref[...], t.astype(jnp.bfloat16),
                        preferred_element_type=jnp.float32)
        # Zero rows/cols of wy/wxt give r == 0 in the padded region, so the
        # epilogue yields (0/255 - mean)/std == bias there, matching F.pad.
        o_ref[0, 0] = (r * s + bb).astype(o_ref.dtype)

    return kernel


def fast_base_transform(img: jnp.ndarray, size: int,
                        out_dtype=jnp.float32) -> jnp.ndarray:
    """JAX/Pallas equivalent of FastBaseTransform(size).forward(img).

    img: (b, h, w, c), values in [0, 255] (NHWC like the PyTorch input).
    out_dtype: float32 matches the PyTorch module; bfloat16 halves the
      dominant HBM store traffic if the downstream backbone runs in bf16.
    """
    b, h, w, c = img.shape

    # glue: NHWC -> NCHW fused with the f32->bf16 cast (single XLA pass; no
    # separate f32 intermediate, half the transpose write traffic).
    x_bf = jnp.transpose(img.astype(jnp.bfloat16), (0, 3, 1, 2))

    tall = h >= w                           # static aspect branch (as in PyTorch)
    if tall:
        scale_f = size / h
        new_h, new_w = size, int(scale_f * w)
        top_pad, left_pad = 0, (size - new_w) // 2
    else:
        scale_f = size / w
        new_h, new_w = int(h * scale_f), size
        top_pad, left_pad = (size - new_h) // 2, 0

    # Interpolation matrices with the zero-padding folded in. Exact output
    # extents (no padded rows/lanes) -> no post-kernel slice, no wasted flops.
    wy = jnp.zeros((size, h), jnp.float32)
    wy = wy.at[top_pad:top_pad + new_h, :].set(_interp_matrix(new_h, h))
    wxt = jnp.zeros((w, size), jnp.float32)
    wxt = wxt.at[:, left_pad:left_pad + new_w].set(_interp_matrix(new_w, w).T)

    if c == 3:
        mean = jnp.array([0.485, 0.456, 0.406], jnp.float32)
        std = jnp.array([0.229, 0.224, 0.225], jnp.float32)
    else:
        # c != 3: PyTorch path skips Normalize -> identity affine.
        mean = jnp.zeros((c,), jnp.float32)
        std = jnp.ones((c,), jnp.float32)
    scale = 1.0 / (255.0 * std)             # folds /255 and Normalize into r*s+b
    bias = -mean / std

    # bf16 MXU operands with f32 accumulation (native-rate path).
    wy_bf = wy.astype(jnp.bfloat16)
    wxt_bf = wxt.astype(jnp.bfloat16)

    # Generation-aware VMEM budget derived from the actual block shapes.
    try:
        vmem_cap = int(pltpu.get_tpu_info().vmem_capacity_bytes)
    except Exception:
        vmem_cap = 64 << 20                 # conservative (v7x per-TC VMEM)
    vmem_budget = int(vmem_cap * 0.82)      # ~52 MB on v7x, ~105 MB on v5e/v6e

    out_bytes = jnp.dtype(out_dtype).itemsize
    req = (2 * h * w * 2                    # x plane (bf16), double-buffered
           + 2 * size * h * 2               # wy (constant index; 2 bufs allocated)
           + 2 * w * size * 2               # wxt (constant index)
           + 2 * size * size * out_bytes    # output plane, double-buffered
           + size * max(h, w) * 6           # matmul intermediate (f32 + bf16 copy)
           + size * size * 4)               # f32 result before the epilogue cast
    vmem_limit_bytes = int(min(vmem_budget,
                               max(int(req * 1.25) + (2 << 20), 16 << 20)))

    out = pl.pallas_call(
        _make_kernel(tall),
        out_shape=jax.ShapeDtypeStruct((b, c, size, size), out_dtype),
        grid=(b, c),
        in_specs=[
            pl.BlockSpec((1, 1, h, w), lambda bi, ci: (bi, ci, 0, 0)),
            pl.BlockSpec((size, h), lambda bi, ci: (0, 0)),
            pl.BlockSpec((w, size), lambda bi, ci: (0, 0)),
            pl.BlockSpec(memory_space=pltpu.MemorySpace.SMEM),
            pl.BlockSpec(memory_space=pltpu.MemorySpace.SMEM),
        ],
        out_specs=pl.BlockSpec((1, 1, size, size),
                               lambda bi, ci: (bi, ci, 0, 0)),
        compiler_params=pltpu.CompilerParams(
            dimension_semantics=("parallel", "parallel"),
            vmem_limit_bytes=vmem_limit_bytes),
    )(x_bf, wy_bf, wxt_bf, scale, bias)

    # glue: replicate torch .squeeze() / conditional .unsqueeze(0)
    out = jnp.squeeze(out)
    if c != 3:
        out = jnp.expand_dims(out, 0)
    return out


def _reference(img: jnp.ndarray, size: int) -> jnp.ndarray:
    """Pure-JAX f32 reference of the same forward pass (for tolerance check)."""
    b, h, w, c = img.shape
    x = jnp.transpose(img, (0, 3, 1, 2)).astype(jnp.float32)
    if h >= w:
        new_h, new_w = size, int((size / h) * w)
        top_pad, left_pad = 0, (size - new_w) // 2
    else:
        new_h, new_w = int(h * (size / w)), size
        top_pad, left_pad = (size - new_h) // 2, 0
    wy = jnp.zeros((size, h), jnp.float32)
    wy = wy.at[top_pad:top_pad + new_h, :].set(_interp_matrix(new_h, h))
    wxt = jnp.zeros((w, size), jnp.float32)
    wxt = wxt.at[:, left_pad:left_pad + new_w].set(_interp_matrix(new_w, w).T)
    r = jnp.einsum('yh,bchw,wx->bcyx', wy, x, wxt)
    if c == 3:
        mean = jnp.array([0.485, 0.456, 0.406], jnp.float32)
        std = jnp.array([0.229, 0.224, 0.225], jnp.float32)
    else:
        mean = jnp.zeros((c,), jnp.float32)
        std = jnp.ones((c,), jnp.float32)
    out = (r / 255.0 - mean[None, :, None, None]) / std[None, :, None, None]
    out = jnp.squeeze(out)
    if c != 3:
        out = jnp.expand_dims(out, 0)
    return out


if __name__ == "__main__":
    key = jax.random.PRNGKey(0)
    size = 16
    k1, k2, k3 = jax.random.split(key, 3)

    # tall branch (h >= w): resize (12, 8) -> (16, 10), zero-pad width
    img_tall = jax.random.uniform(k1, (2, 12, 8, 3), jnp.float32, 0.0, 255.0)
    # wide branch (w > h): resize (8, 12) -> (10, 16), zero-pad height
    img_wide = jax.random.uniform(k2, (2, 8, 12, 3), jnp.float32, 0.0, 255.0)
    # c != 3 path: skips Normalize, keeps /255, re-adds the batch dim
    img_c4 = jax.random.uniform(k3, (1, 8, 12, 4), jnp.float32, 0.0, 255.0)

    fn = jax.jit(functools.partial(fast_base_transform, size=size))

    cases = []
    for img in (img_tall, img_wide, img_c4):
        out = jax.block_until_ready(fn(img))
        cases.append((img, out))

    expected_shapes = [(2, 3, size, size), (2, 3, size, size), (1, 4, size, size)]
    for (img, out), shp in zip(cases, expected_shapes):
        assert out.shape == shp, (out.shape, shp)
        assert bool(jnp.all(jnp.isfinite(out)))
        ref = _reference(img, size)
        err = float(jnp.max(jnp.abs(out - ref)))
        # bf16 pixels (0..255) + bf16 interp weights vs f32 reference:
        # worst-case ~a few 1e-2 after normalization.
        assert err < 0.1, err

    print("KERNEL_OK")
</pallas_src>

<mosaic_0001>
module attributes {stable_mosaic.version = 11 : i64} {
  func.func private @main(%arg0: i32) attributes {dimension_semantics = [#tpu.dimension_semantics<core_parallel>], iteration_bounds = array<i64: 2>, tpu.core_type = #tpu.core_type<sc_scalar_subcore>, window_params = []} {
    return
  }
}

module attributes {stable_mosaic.version = 11 : i64} {
  func.func private @main(%arg0: i32) attributes {dimension_semantics = [#tpu.dimension_semantics<core_parallel>], iteration_bounds = array<i64: 2>, tpu.core_type = #tpu.core_type<sc_scalar_subcore>, window_params = []} {
    return
  }
}

module attributes {stable_mosaic.version = 11 : i64} {
  func.func @kernel(%arg0: i32, %arg1: i32, %arg2: memref<1x1x12x8xbf16, #tpu.memory_space<vmem>>, %arg3: memref<16x12xbf16, #tpu.memory_space<vmem>>, %arg4: memref<8x16xbf16, #tpu.memory_space<vmem>>, %arg5: memref<3xf32, #tpu.memory_space<smem>>, %arg6: memref<3xf32, #tpu.memory_space<smem>>, %arg7: memref<1x1x16x16xf32, #tpu.memory_space<vmem>>) attributes {dimension_semantics = [#tpu.dimension_semantics<parallel>, #tpu.dimension_semantics<parallel>], iteration_bounds = array<i64: 2, 3>, scalar_prefetch = 0 : i64, scratch_operands = 0 : i64, tpu.core_type = #tpu.core_type<tc>, window_params = [{transform_indices = @transform_0, window_bounds = array<i64: 1, 1, 12, 8>}, {pipeline_mode = #tpu.pipeline_mode<synchronous>, transform_indices = @transform_1, window_bounds = array<i64: 16, 12>}, {pipeline_mode = #tpu.pipeline_mode<synchronous>, transform_indices = @transform_2, window_bounds = array<i64: 8, 16>}, {transform_indices = @transform_3, window_bounds = array<i64: 3>}, {transform_indices = @transform_4, window_bounds = array<i64: 3>}, {transform_indices = @transform_5, window_bounds = array<i64: 1, 1, 16, 16>}]} {
    %0 = arith.index_cast %arg1 : i32 to index
    %1 = memref.load %arg5[%0] : memref<3xf32, #tpu.memory_space<smem>>
    %2 = arith.index_cast %arg1 : i32 to index
    %3 = memref.load %arg6[%2] : memref<3xf32, #tpu.memory_space<smem>>
    %c0 = arith.constant 0 : index
    %c0_0 = arith.constant 0 : index
    %c0_1 = arith.constant 0 : index
    %c0_2 = arith.constant 0 : index
    %4 = vector.load %arg2[%c0, %c0_0, %c0_1, %c0_2] : memref<1x1x12x8xbf16, #tpu.memory_space<vmem>>, vector<1x1x12x8xbf16>
    %5 = vector.shape_cast %4 : vector<1x1x12x8xbf16> to vector<12x8xbf16>
    %c0_3 = arith.constant 0 : index
    %c0_4 = arith.constant 0 : index
    %6 = vector.load %arg3[%c0_3, %c0_4] : memref<16x12xbf16, #tpu.memory_space<vmem>>, vector<16x12xbf16>
    %cst = arith.constant dense<0.000000e+00> : vector<16x8xf32>
    %7 = tpu.matmul %6, %5, %cst {dimension_numbers = #tpu.dot_dimension_numbers<[1], [0], [0], [1], [0, 0, 1, 1], [], []>} : vector<16x12xbf16>, vector<12x8xbf16>, vector<16x8xf32> -> vector<16x8xf32>
    %8 = arith.truncf %7 : vector<16x8xf32> to vector<16x8xbf16>
    %c0_5 = arith.constant 0 : index
    %c0_6 = arith.constant 0 : index
    %9 = vector.load %arg4[%c0_5, %c0_6] : memref<8x16xbf16, #tpu.memory_space<vmem>>, vector<8x16xbf16>
    %cst_7 = arith.constant dense<0.000000e+00> : vector<16x16xf32>
    %10 = tpu.matmul %8, %9, %cst_7 {dimension_numbers = #tpu.dot_dimension_numbers<[1], [0], [0], [1], [0, 0, 1, 1], [], []>} : vector<16x8xbf16>, vector<8x16xbf16>, vector<16x16xf32> -> vector<16x16xf32>
    %11 = vector.broadcast %1 : f32 to vector<16x16xf32>
    %12 = arith.mulf %10, %11 : vector<16x16xf32>
    %13 = vector.broadcast %3 : f32 to vector<16x16xf32>
    %14 = arith.addf %12, %13 : vector<16x16xf32>
    %c0_8 = arith.constant 0 : index
    %c0_9 = arith.constant 0 : index
    %c0_10 = arith.constant 0 : index
    %c0_11 = arith.constant 0 : index
    %15 = vector.load %arg7[%c0_8, %c0_9, %c0_10, %c0_11] : memref<1x1x16x16xf32, #tpu.memory_space<vmem>>, vector<1x1x16x16xf32>
    %16 = vector.shape_cast %15 : vector<1x1x16x16xf32> to vector<16x16xf32>
    %17 = vector.shape_cast %14 : vector<16x16xf32> to vector<1x1x16x16xf32>
    tpu.vector_store %arg7[%c0_8, %c0_9, %c0_10, %c0_11], %17 {strides = array<i32>} : memref<1x1x16x16xf32, #tpu.memory_space<vmem>>, vector<1x1x16x16xf32>,
    return
  }
  func.func @transform_0(%arg0: i32, %arg1: i32) -> (i32, i32, i32, i32) {
    %c0_i32 = arith.constant 0 : i32
    %c0_i32_0 = arith.constant 0 : i32
    %c0_i32_1 = arith.constant 0 : i32
    return %arg0, %arg1, %c0_i32, %c0_i32_0 : i32, i32, i32, i32
  }
  func.func @transform_1(%arg0: i32, %arg1: i32) -> (i32, i32) {
    %c0_i32 = arith.constant 0 : i32
    %c0_i32_0 = arith.constant 0 : i32
    %c0_i32_1 = arith.constant 0 : i32
    return %c0_i32, %c0_i32_0 : i32, i32
  }
  func.func @transform_2(%arg0: i32, %arg1: i32) -> (i32, i32) {
    %c0_i32 = arith.constant 0 : i32
    %c0_i32_0 = arith.constant 0 : i32
    %c0_i32_1 = arith.constant 0 : i32
    return %c0_i32, %c0_i32_0 : i32, i32
  }
  func.func @transform_3(%arg0: i32, %arg1: i32) -> i32 {
    %c0_i32 = arith.constant 0 : i32
    %c0_i32_0 = arith.constant 0 : i32
    return %c0_i32 : i32
  }
  func.func @transform_4(%arg0: i32, %arg1: i32) -> i32 {
    %c0_i32 = arith.constant 0 : i32
    %c0_i32_0 = arith.constant 0 : i32
    return %c0_i32 : i32
  }
  func.func @transform_5(%arg0: i32, %arg1: i32) -> (i32, i32, i32, i32) {
    %c0_i32 = arith.constant 0 : i32
    %c0_i32_0 = arith.constant 0 : i32
    %c0_i32_1 = arith.constant 0 : i32
    return %arg0, %arg1, %c0_i32, %c0_i32_0 : i32, i32, i32, i32
  }
}

</mosaic_0001>

<llo_original>
// kernel: fast_base_transform.1
$region0: #{fast_base_transform.1}
  #allocation0 [shape = 'u32[]', space=smem, size = 0x4, offset = 0x4, fixed_abs, tag = 'smem constant byte address 0x4 - core index']
  #allocation1 [shape = 'u32[144,128]{1,0:T(1,128)}', space=vmem, size = 0x12000, scoped, tag = 'internal scratch']
  %s0 = inlined_call_operand.vmem [shape: bf16[2,3,12,8], index: 0, kind: input, shape index: {}]
  %s1 = inlined_call_operand.vmem [shape: bf16[16,12], index: 1, kind: input, shape index: {}]
  %s2 = inlined_call_operand.vmem [shape: bf16[8,16], index: 2, kind: input, shape index: {}]
  %s3 = inlined_call_operand.vmem [shape: f32[3], index: 3, kind: input, shape index: {}]
  %s4 = inlined_call_operand.vmem [shape: f32[3], index: 4, kind: input, shape index: {}]
  %s5 = inlined_call_operand.hbm [shape: f32[2,3,16,16], index: 5, kind: output, shape index: {}]
  %s6 = sld [smem:[#allocation0]]
  $region61: #{fast_base_transform.1} parent=0
    _
  %s8 = ssub.s32 1, %s6
  %s9 = scalar_select 0, %s8, %s6
  $region1: #{fast_base_transform.1} parent=0
    #allocation2 [shape = 'u8[512]{0}', space=smem, size = 0x200, scoped, tag = 'input window, operand 3, single buffered']
    #allocation3 [shape = 's32[2]{0}', space=sflag, size = 0x8, scoped, tag = 'scoped memory for fast_base_transform.1']
    #allocation4 [shape = 's32[2]{0}', space=sflag, size = 0x8, scoped, tag = 'scoped memory for fast_base_transform.1']
    #allocation5 [shape = 'u8[512]{0}', space=smem, size = 0x200, scoped, tag = 'input window, operand 4, single buffered']
    #allocation6 [shape = 's32[1]{0}', space=sflag, size = 0x4, scoped, tag = 'scoped memory for fast_base_transform.1']
    #allocation7 [shape = 'u8[16384]{0}', space=vmem, size = 0x4000, scoped, tag = 'output window, operand 0']
    %10 = vsyncpa [#allocation4], 0
    %11 = vsyncpa [#allocation6], 0
    %12 = vsyncpa [#allocation3], 0
    %s13 = scalar_lea.sflag [#allocation3], 1
    %14 = vsyncpa %s13, 0
    loop: start=0, step=1, limit=8
    $region2: #{fast_base_transform.1} parent=1 // loop_pre_header
      _
    $region3: #{fast_base_transform.1} parent=1 // loop_header
      %s16 = sphi 0, %s20
      %p17 = scmp.ge.s32.totalorder %s16, 8
      %s23 = sphi 0, %s35
      %s24 = sphi 0, %s31
      %s25 = sphi 0, %s23
      %s26 = sphi 0, %s24
      %s27 = sphi 0, %s25
      %s28 = sphi 0, %s26
      %s40 = sphi 0, %s42
      %s43 = sphi 0, %s40
      %s44 = sphi 0, %s43
      %s60 = sphi 0, %s44
      %s64 = sphi 0, %s64
      %s66 = sphi 0, %s64
      %s67 = sphi 0, %s66
      %s81 = sphi 0, %s67
      %s85 = sphi 0, %s85
      %s87 = sphi 0, %s85
      %s88 = sphi 0, %s87
      %s102 = sphi 0, %s88
      %s106 = sphi 0, %s106
      %s108 = sphi 0, %s106
      %s109 = sphi 0, %s108
      %s123 = sphi 0, %s109
      %s127 = sphi 0, %s127
      %s129 = sphi 0, %s127
      %s130 = sphi 0, %s129
      %s144 = sphi 0, %s130
      %s152 = sphi 0, %s154
      %s155 = sphi 0, %s152
      %s156 = sphi 0, %s155
      %s172 = sphi 0, %s156
    $region4: #{fast_base_transform.1} parent=1 // loop_header_branch
      %19 = sbr.rel (%p17) target = $region8
    $region5: #{fast_base_transform.1} parent=1 // loop_body
      %s21 = ssub.s32 %s16, 1
      %s22 = ssub.s32 %s16, 2
      %s29 = sadd.s32 1, %s24
      %p30 = scmp.ge.s32.totalorder %s29, 3
      %s31 = scalar_select %p30, 0, %s29
      %s32 = sadd.s32 1, %s23
      %s33 = scalar_select %p30, %s32, %s23
      %p34 = scmp.ge.s32.totalorder %s33, 2
      %s35 = scalar_select %p34, 0, %s33
      %s36 = ssub.s32 %s23, %s35
      %s37 = ssub.s32 %s24, %s31
      %s38 = sor.u32 %s36, %s37
      %p39 = scmp.eq.s32.totalorder %s38, 0
      %s41 = sadd.s32 %s40, 1
      %s42 = scalar_select %p39, %s40, %s41
      %p45 = pneg %p39
      %p46 = scmp.eq.s32.totalorder %s16, 5
      %p47 = por %p45, %p46
      %p48 = scmp.ne.s32.totalorder %s40, %s43
      %p49 = scmp.eq.s32.totalorder %s16, 0
      %p50 = por %p48, %p49
      %p51 = scmp.ne.s32.totalorder %s40, %s43
      %p52 = scmp.eq.s32.totalorder %s21, 5
      %p53 = por %p51, %p52
      %p54 = scmp.ne.s32.totalorder %s43, %s44
      %p55 = scmp.eq.s32.totalorder %s21, 0
      %p56 = por %p54, %p55
      %p57 = scmp.ne.s32.totalorder %s43, %s44
      %p58 = scmp.eq.s32.totalorder %s22, 5
      %p59 = por %p57, %p58
      %p61 = scmp.ne.s32.totalorder %s44, %s60
      %p62 = scmp.eq.s32.totalorder %s22, 0
      %p63 = por %p61, %p62
      %s65 = sadd.s32 %s64, 1
      %p68 = scmp.eq.s32.totalorder %s16, 5
      %p69 = scmp.ne.s32.totalorder %s64, %s66
      %p70 = scmp.eq.s32.totalorder %s16, 0
      %p71 = por %p69, %p70
      %p72 = scmp.ne.s32.totalorder %s64, %s66
      %p73 = scmp.eq.s32.totalorder %s21, 5
      %p74 = por %p72, %p73
      %p75 = scmp.ne.s32.totalorder %s66, %s67
      %p76 = scmp.eq.s32.totalorder %s21, 0
      %p77 = por %p75, %p76
      %p78 = scmp.ne.s32.totalorder %s66, %s67
      %p79 = scmp.eq.s32.totalorder %s22, 5
      %p80 = por %p78, %p79
      %p82 = scmp.ne.s32.totalorder %s67, %s81
      %p83 = scmp.eq.s32.totalorder %s22, 0
      %p84 = por %p82, %p83
      %s86 = sadd.s32 %s85, 1
      %p89 = scmp.eq.s32.totalorder %s16, 5
      %p90 = scmp.ne.s32.totalorder %s85, %s87
      %p91 = scmp.eq.s32.totalorder %s16, 0
      %p92 = por %p90, %p91
      %p93 = scmp.ne.s32.totalorder %s85, %s87
      %p94 = scmp.eq.s32.totalorder %s21, 5
      %p95 = por %p93, %p94
      %p96 = scmp.ne.s32.totalorder %s87, %s88
      %p97 = scmp.eq.s32.totalorder %s21, 0
      %p98 = por %p96, %p97
      %p99 = scmp.ne.s32.totalorder %s87, %s88
      %p100 = scmp.eq.s32.totalorder %s22, 5
      %p101 = por %p99, %p100
      %p103 = scmp.ne.s32.totalorder %s88, %s102
      %p104 = scmp.eq.s32.totalorder %s22, 0
      %p105 = por %p103, %p104
      %s107 = sadd.s32 %s106, 1
      %p110 = scmp.eq.s32.totalorder %s16, 5
      %p111 = scmp.ne.s32.totalorder %s106, %s108
      %p112 = scmp.eq.s32.totalorder %s16, 0
      %p113 = por %p111, %p112
      %p114 = scmp.ne.s32.totalorder %s106, %s108
      %p115 = scmp.eq.s32.totalorder %s21, 5
      %p116 = por %p114, %p115
      %p117 = scmp.ne.s32.totalorder %s108, %s109
      %p118 = scmp.eq.s32.totalorder %s21, 0
      %p119 = por %p117, %p118
      %p120 = scmp.ne.s32.totalorder %s108, %s109
      %p121 = scmp.eq.s32.totalorder %s22, 5
      %p122 = por %p120, %p121
      %p124 = scmp.ne.s32.totalorder %s109, %s123
      %p125 = scmp.eq.s32.totalorder %s22, 0
      %p126 = por %p124, %p125
      %s128 = sadd.s32 %s127, 1
      %p131 = scmp.eq.s32.totalorder %s16, 5
      %p132 = scmp.ne.s32.totalorder %s127, %s129
      %p133 = scmp.eq.s32.totalorder %s16, 0
      %p134 = por %p132, %p133
      %p135 = scmp.ne.s32.totalorder %s127, %s129
      %p136 = scmp.eq.s32.totalorder %s21, 5
      %p137 = por %p135, %p136
      %p138 = scmp.ne.s32.totalorder %s129, %s130
      %p139 = scmp.eq.s32.totalorder %s21, 0
      %p140 = por %p138, %p139
      %p141 = scmp.ne.s32.totalorder %s129, %s130
      %p142 = scmp.eq.s32.totalorder %s22, 5
      %p143 = por %p141, %p142
      %p145 = scmp.ne.s32.totalorder %s130, %s144
      %p146 = scmp.eq.s32.totalorder %s22, 0
      %p147 = por %p145, %p146
      %s148 = ssub.s32 %s23, %s35
      %s149 = ssub.s32 %s24, %s31
      %s150 = sor.u32 %s148, %s149
      %p151 = scmp.eq.s32.totalorder %s150, 0
      %s153 = sadd.s32 %s152, 1
      %s154 = scalar_select %p151, %s152, %s153
      %p157 = pneg %p151
      %p158 = scmp.eq.s32.totalorder %s16, 5
      %p159 = por %p157, %p158
      %p160 = scmp.ne.s32.totalorder %s152, %s155
      %p161 = scmp.eq.s32.totalorder %s16, 0
      %p162 = por %p160, %p161
      %p163 = scmp.ne.s32.totalorder %s152, %s155
      %p164 = scmp.eq.s32.totalorder %s21, 5
      %p165 = por %p163, %p164
      %p166 = scmp.ne.s32.totalorder %s155, %s156
      %p167 = scmp.eq.s32.totalorder %s21, 0
      %p168 = por %p166, %p167
      %p169 = scmp.ne.s32.totalorder %s155, %s156
      %p170 = scmp.eq.s32.totalorder %s22, 5
      %p171 = por %p169, %p170
      %p173 = scmp.ne.s32.totalorder %s156, %s172
      %p174 = scmp.eq.s32.totalorder %s22, 0
      %p175 = por %p173, %p174
      %p176 = scmp.le.s32.totalorder 1, %s16
      %p177 = scmp.lt.s32.totalorder %s16, 7
      %p178 = pnand %p176, %p177
      %p179 = pneg %p178
      // Predicated region
      $region9: #{fast_base_transform.1} parent=5 // pred_check
        _
      $region10: #{fast_base_transform.1} parent=5 // pred_check_branch
        %181 = sbr.rel (%p178) target = $region12
      $region11: #{fast_base_transform.1} parent=5 // pred_region
        %s182 = ssub.s32 %s16, 1
        // Predicated region
        $region13: #{fast_base_transform.1} parent=11 // pred_check
          %p183 = pneg %p77
        $region14: #{fast_base_transform.1} parent=11 // pred_check_branch
          %185 = sbr.rel (%p183) target = $region16
        $region15: #{fast_base_transform.1} parent=11 // pred_region
          _
        $region16: #{fast_base_transform.1} parent=11 // pred_fallthru
          _
        // Predicated region
        $region17: #{fast_base_transform.1} parent=11 // pred_check
          %p186 = pneg %p98
        $region18: #{fast_base_transform.1} parent=11 // pred_check_branch
          %188 = sbr.rel (%p186) target = $region20
        $region19: #{fast_base_transform.1} parent=11 // pred_region
          _
        $region20: #{fast_base_transform.1} parent=11 // pred_fallthru
          _
        // Predicated region
        $region21: #{fast_base_transform.1} parent=11 // pred_check
          %p189 = pneg %p119
        $region22: #{fast_base_transform.1} parent=11 // pred_check_branch
          %191 = sbr.rel (%p189) target = $region24
        $region23: #{fast_base_transform.1} parent=11 // pred_region
          %s193 = ssub.s32 16, 16
          %194 = vsyncadd [#allocation4], %s193
          %s196 = sshll.u32 %s3, 4
          %s197 = int_to_ptr.vmem [resolvable:$true] %s196
          %199 = dma.vmem_to_smem %s197, 16, [#allocation2], [#allocation4]
        $region24: #{fast_base_transform.1} parent=11 // pred_fallthru
          _
        // Predicated region
        $region25: #{fast_base_transform.1} parent=11 // pred_check
          %p200 = pneg %p140
        $region26: #{fast_base_transform.1} parent=11 // pred_check_branch
          %202 = sbr.rel (%p200) target = $region28
        $region27: #{fast_base_transform.1} parent=11 // pred_region
          %s204 = ssub.s32 16, 16
          %205 = vsyncadd [#allocation6], %s204
          %s207 = sshll.u32 %s4, 4
          %s208 = int_to_ptr.vmem [resolvable:$true] %s207
          %210 = dma.vmem_to_smem %s208, 16, [#allocation5], [#allocation6]
        $region28: #{fast_base_transform.1} parent=11 // pred_fallthru
          _
      $region12: #{fast_base_transform.1} parent=5 // pred_fallthru
        _
      %p211 = scmp.lt.s32.totalorder %s16, 6
      // Predicated region
      $region29: #{fast_base_transform.1} parent=5 // pred_check
        %p212 = pneg %p211
      $region30: #{fast_base_transform.1} parent=5 // pred_check_branch
        %214 = sbr.rel (%p212) target = $region32
      $region31: #{fast_base_transform.1} parent=5 // pred_region
        // Predicated region
        $region33: #{fast_base_transform.1} parent=31 // pred_check
          %p215 = pneg %p50
        $region34: #{fast_base_transform.1} parent=31 // pred_check_branch
          %217 = sbr.rel (%p215) target = $region36
        $region35: #{fast_base_transform.1} parent=31 // pred_region
          %p218 = scmp.lt.s32.totalorder %s23, 1
          %s219 = scalar_select %p218, %s23, 1
          %p220 = scmp.lt.s32.totalorder %s24, 2
          %s221 = scalar_select %p220, %s24, 2
          %s222 = smul.addr %s221, 2
          %s223 = smul.addr %s219, 6
          %s224 = sadd.s32 %s222, %s223
          %s225 = smul.addr %s224, 4
          %s226 = scalar_lea.vmem %s0, %s225
        $region36: #{fast_base_transform.1} parent=31 // pred_fallthru
          _
      $region32: #{fast_base_transform.1} parent=5 // pred_fallthru
        _
      %p227 = scmp.le.s32.totalorder 1, %s16
      %p228 = scmp.lt.s32.totalorder %s16, 7
      %p229 = pnand %p227, %p228
      %p230 = pneg %p229
      // Predicated region
      $region37: #{fast_base_transform.1} parent=5 // pred_check
        _
      $region38: #{fast_base_transform.1} parent=5 // pred_check_branch
        %232 = sbr.rel (%p229) target = $region40
      $region39: #{fast_base_transform.1} parent=5 // pred_region
        %s233 = ssub.s32 %s16, 1
        // Predicated region
        $region41: #{fast_base_transform.1} parent=39 // pred_check
          %p234 = pneg %p119
        $region42: #{fast_base_transform.1} parent=39 // pred_check_branch
          %236 = sbr.rel (%p234) target = $region44
        $region43: #{fast_base_transform.1} parent=39 // pred_region
          %237 = dma.done [#allocation4], 16
        $region44: #{fast_base_transform.1} parent=39 // pred_fallthru
          _
        // Predicated region
        $region45: #{fast_base_transform.1} parent=39 // pred_check
          %p238 = pneg %p140
        $region46: #{fast_base_transform.1} parent=39 // pred_check_branch
          %240 = sbr.rel (%p238) target = $region48
        $region47: #{fast_base_transform.1} parent=39 // pred_region
          %241 = dma.done [#allocation6], 16
        $region48: #{fast_base_transform.1} parent=39 // pred_fallthru
          _
        %242 = sfence
        %p243 = scmp.lt.s32.totalorder %s25, 1
        %s244 = scalar_select %p243, %s25, 1
        %p245 = scmp.lt.s32.totalorder %s26, 2
        %s246 = scalar_select %p245, %s26, 2
        %s247 = smul.addr %s246, 2
        %s248 = smul.addr %s244, 6
        %s249 = sadd.s32 %s247, %s248
        %s250 = smul.addr %s249, 4
        %s251 = scalar_lea.vmem %s0, %s250
        %p252 = pneg %p56
        %p253 = pneg %p53
        %p254 = pneg %p77
        %p255 = pneg %p74
        %p256 = pneg %p98
        %p257 = pneg %p95
        %p258 = pneg %p119
        %p259 = pneg %p116
        %p260 = pneg %p140
        %p261 = pneg %p137
        %p262 = pneg %p168
        %p263 = pneg %p165
        %s264 = sand.u32 %s155, 1
        %s265 = scalar_lea.sflag [#allocation3], %s264
        %s266 = sand.u32 %s155, 1
        %s267 = smul.addr %s266, 16
        %s268 = scalar_lea.vmem [#allocation7], %s267
        %p269 = scmp.lt.s32.totalorder %s25, 1
        %s270 = scalar_select %p269, %s25, 1
        %p271 = scmp.lt.s32.totalorder %s26, 2
        %s272 = scalar_select %p271, %s26, 2
        %s273 = smul.addr %s272, 2
        %s274 = smul.addr %s270, 6
        %s275 = sadd.s32 %s273, %s274
        %s276 = smul.addr %s275, 4
        %s277 = scalar_lea.vmem %s0, %s276
        %s279 = sld [smem:[#allocation2 + %s26]]
        %s280 = sld [smem:[#allocation5 + %s26]]
        %v281 = vld [vmem:[%s277] sm:$0xf]
        %v282 = vld [vmem:[%s277 + $0x4] sm:$0x3]
        %v283 = vld [vmem:[%s1] sm:$0xf]
        %v284 = vld [vmem:[%s1 + $0x4] sm:$0xf]
        %v287 = vunpack.c.l.b16 %v283
        %v288 = vunpack.c.l.b16 %v284
        %v289 = vpack.c.b16 %v288, %v287
        %v292 = vunpack.c.l.b16 %v281
        %v293 = vunpack.c.l.b16 %v282
        %v294 = vpack.c.b16 %v293, %v292
        %vm295 = vcmask 97280
        %v297 = vsel %vm295, %v289, 0
        %vm299 = vcmask 1045504
        %v301 = vsel %vm299, %v294, 0
        %303 = vmatprep.subr.bf16.mxu0 0
        %304 = vmatpush1.bf16.msra.mxu0 0
        %305 = vmatprep.subr.bf16.mxu0 0
        %306 = vmatpush1.bf16.msra.mxu0 0
        %307 = vmatprep.subr.bf16.mxu0 0
        %308 = vmatpush1.bf16.msra.mxu0 0
        %309 = vmatprep.subr.bf16.mxu0 0
        %310 = vmatpush1.bf16.msra.mxu0 0
        %311 = vmatprep.subr.bf16.mxu0 0
        %312 = vmatpush1.bf16.msra.mxu0 0
        %313 = vmatprep.subr.bf16.mxu0 0
        %314 = vmatpush1.bf16.msra.mxu0 0
        %315 = vmatprep.subr.bf16.mxu0 0
        %316 = vmatpush1.bf16.msra.mxu0 0
        %317 = vmatprep.subr.bf16.mxu0 0
        %318 = vmatpush1.bf16.msra.mxu0 %v301
        %319 = vmatprep.subr.bf16.mxu0 0
        %320 = vmatpush2.bf16.msra.mxu0 0
        %321 = vmatprep.subr.bf16.mxu0 0
        %322 = vmatpush2.bf16.msra.mxu0 0
        %323 = vmatprep.subr.bf16.mxu0 0
        %324 = vmatpush2.bf16.msra.mxu0 0
        %325 = vmatprep.subr.bf16.mxu0 0
        %326 = vmatpush2.bf16.msra.mxu0 0
        %327 = vmatprep.subr.bf16.mxu0 0
        %328 = vmatpush2.bf16.msra.mxu0 0
        %329 = vmatprep.subr.bf16.mxu0 0
        %330 = vmatpush2.bf16.msra.mxu0 0
        %331 = vmatprep.subr.bf16.mxu0 0
        %332 = vmatpush2.bf16.msra.mxu0 0
        %333 = vmatprep.subr.bf16.mxu0 0
        %334 = vmatpush2.bf16.msra.mxu0 0
        %335 = vmatprep.mubr.bf16.mxu0 0
        %336 = vmatmul.mubr.bf16.gmra.mxu0 %v297
        %v337 = vpop.f32.mrf.mxu0
        %v338 = vadd.f32 0.0, %v337
        %v339 = vpop.f32.mrf.mxu0
        %v340 = vpop.f32.mrf.mxu0
        %v341 = vadd.f32 0.0, %v340
        %v342 = vpop.f32.mrf.mxu0
        %343 = vdwg.mxu0
        %v344 = vpack.c.bf16 %v341, %v338
        %v345 = vld [vmem:[%s2] sm:$0xf]
        %vm346 = vcmask 64512
        %v348 = vsel %vm346, %v344, 0
        %vm350 = vcmask 1043456
        %v352 = vsel %vm350, %v345, 0
        %354 = vmatprep.subr.bf16.mxu0 0
        %355 = vmatpush1.bf16.msra.mxu0 0
        %356 = vmatprep.subr.bf16.mxu0 0
        %357 = vmatpush1.bf16.msra.mxu0 0
        %358 = vmatprep.subr.bf16.mxu0 0
        %359 = vmatpush1.bf16.msra.mxu0 0
        %360 = vmatprep.subr.bf16.mxu0 0
        %361 = vmatpush1.bf16.msra.mxu0 0
        %362 = vmatprep.subr.bf16.mxu0 0
        %363 = vmatpush1.bf16.msra.mxu0 0
        %364 = vmatprep.subr.bf16.mxu0 0
        %365 = vmatpush1.bf16.msra.mxu0 0
        %366 = vmatprep.subr.bf16.mxu0 0
        %367 = vmatpush1.bf16.msra.mxu0 0
        %368 = vmatprep.subr.bf16.mxu0 0
        %369 = vmatpush1.bf16.msra.mxu0 %v352
        %370 = vmatprep.subr.bf16.mxu0 0
        %371 = vmatpush2.bf16.msra.mxu0 0
        %372 = vmatprep.subr.bf16.mxu0 0
        %373 = vmatpush2.bf16.msra.mxu0 0
        %374 = vmatprep.subr.bf16.mxu0 0
        %375 = vmatpush2.bf16.msra.mxu0 0
        %376 = vmatprep.subr.bf16.mxu0 0
        %377 = vmatpush2.bf16.msra.mxu0 0
        %378 = vmatprep.subr.bf16.mxu0 0
        %379 = vmatpush2.bf16.msra.mxu0 0
        %380 = vmatprep.subr.bf16.mxu0 0
        %381 = vmatpush2.bf16.msra.mxu0 0
        %382 = vmatprep.subr.bf16.mxu0 0
        %383 = vmatpush2.bf16.msra.mxu0 0
        %384 = vmatprep.subr.bf16.mxu0 0
        %385 = vmatpush2.bf16.msra.mxu0 0
        %386 = vmatprep.mubr.bf16.mxu0 0
        %387 = vmatmul.mubr.bf16.gmra.mxu0 %v348
        %v388 = vpop.f32.mrf.mxu0
        %v389 = vadd.f32 0.0, %v388
        %v390 = vpop.f32.mrf.mxu0
        %v391 = vpop.f32.mrf.mxu0
        %v392 = vadd.f32 0.0, %v391
        %v393 = vpop.f32.mrf.mxu0
        %394 = vdwg.mxu0
        %v395 = vstv %s279
        %v396 = vmul.f32 %v389, %v395
        %v397 = vmul.f32 %v392, %v395
        %v398 = vstv %s280
        %v399 = vadd.f32 %v396, %v398
        %v400 = vadd.f32 %v397, %v398
        %vm401 = vcmask 130048
        %402 = vst.msk [vmem:[%s268] sm:$0xff] %vm401, %v399
        %403 = vst.msk [vmem:[%s268 + $0x8] sm:$0xff] %vm401, %v400
        %s404 = sand.u32 %s155, 1
        %s405 = scalar_lea.sflag [#allocation3], %s404
        %s406 = sand.u32 %s155, 1
        %s407 = smul.addr %s406, 16
        %s408 = scalar_lea.vmem [#allocation7], %s407
        // Predicated region
        $region49: #{fast_base_transform.1} parent=39 // pred_check
          %p409 = pneg %p165
        $region50: #{fast_base_transform.1} parent=39 // pred_check_branch
          %411 = sbr.rel (%p409) target = $region52
        $region51: #{fast_base_transform.1} parent=39 // pred_region
          %s413 = ssub.s32 256, 256
          %414 = vsyncadd %s405, %s413
          %s415 = smul.addr %s26, 2
          %s416 = smul.addr %s25, 6
          %s417 = sadd.s32 %s415, %s416
          %s418 = smul.addr %s417, 128
          %s419 = scalar_lea.hbm %s5, %s418
          %s420 = sshll.u32 %s408, 4
          %s421 = int_to_ptr.vmem [resolvable:$true] %s420
          %426 = dma.vmem_to_hbm [thread:$0]  %s421, 256, %s419, %s405, 128, 128, 8
        $region52: #{fast_base_transform.1} parent=39 // pred_fallthru
          _
      $region40: #{fast_base_transform.1} parent=5 // pred_fallthru
        _
      %p427 = scmp.le.s32.totalorder 2, %s16
      // Predicated region
      $region53: #{fast_base_transform.1} parent=5 // pred_check
        %p428 = pneg %p427
      $region54: #{fast_base_transform.1} parent=5 // pred_check_branch
        %430 = sbr.rel (%p428) target = $region56
      $region55: #{fast_base_transform.1} parent=5 // pred_region
        %s431 = ssub.s32 %s16, 2
        // Predicated region
        $region57: #{fast_base_transform.1} parent=55 // pred_check
          %p432 = pneg %p171
        $region58: #{fast_base_transform.1} parent=55 // pred_check_branch
          %434 = sbr.rel (%p432) target = $region60
        $region59: #{fast_base_transform.1} parent=55 // pred_region
          %s435 = sand.u32 %s156, 1
          %s436 = scalar_lea.sflag [#allocation3], %s435
          %s437 = sand.u32 %s156, 1
          %s438 = smul.addr %s437, 16
          %s439 = scalar_lea.vmem [#allocation7], %s438
          %440 = dma.done %s436, 256
        $region60: #{fast_base_transform.1} parent=55 // pred_fallthru
          _
      $region56: #{fast_base_transform.1} parent=5 // pred_fallthru
        _
    $region6: #{fast_base_transform.1} parent=1 // loop_footer
      %s20 = sadd.s32 1, %s16
    $region7: #{fast_base_transform.1} parent=1 // loop_footer_branch
      %15 = sbr.rel target = $region3
    $region8: #{fast_base_transform.1} parent=1 // loop_exit
      _
    %441 = vsyncpa [#allocation3], 1
    %s442 = scalar_lea.sflag [#allocation3], 1
    %443 = vsyncpa %s442, 1
    %444 = vsyncpa [#allocation4], 1
    %s445 = scalar_lea.sflag [#allocation4], 1
    %446 = vsyncpa %s445, 1
    %447 = vsyncpa [#allocation6], 1

</llo_original>
